<compile_context>
chip_gen: v7x
topology: tpu7x:2x2x1
jax: 0.10.0
libtpu: 0.0.40
codegen_flags: <defaults>
</compile_context>

<pallas_src>
import functools

import jax
import jax.numpy as jnp
from jax.experimental import pallas as pl
from jax.experimental.pallas import tpu as pltpu

HIDDEN = 128
TILE_B = 4096                        # >=1 MiB of f32 x per grid step at D=64
NOGRID_MAX_BYTES = 8 * 1024 * 1024   # VMEM data budget for the no-grid path


def _mlp_kernel(x_ref, w1_ref, b1_ref, w2_ref, b2_ref, o_ref):
    # fc1: [TB, D] @ [D, H] -> f32 accumulation on the MXU.
    h = jnp.dot(x_ref[...], w1_ref[...], preferred_element_type=jnp.float32)
    # Bias add + ReLU in f32 on the VPU (fast on all chips incl. v5e).
    h = jnp.maximum(h + b1_ref[...], 0.0)
    # fc2: [TB, H] @ [H, O] -> f32 accumulation. O stays lane-dense (unsplit).
    y = jnp.dot(h.astype(w2_ref.dtype), w2_ref[...],
                preferred_element_type=jnp.float32)
    o_ref[...] = (y + b2_ref[...]).astype(o_ref.dtype)


def prepare_params(w1, b1, w2, b2, use_bf16=False):
    """One-time parameter prep: biases pre-shaped to [1, K]; optional bf16
    weights (only worthwhile when x itself arrives in bf16 upstream)."""
    mm_dtype = jnp.bfloat16 if use_bf16 else w1.dtype
    return (
        w1.astype(mm_dtype),
        b1.reshape(1, -1).astype(jnp.float32),
        w2.astype(mm_dtype),
        b2.reshape(1, -1).astype(jnp.float32),
    )


def _round_up(n, m):
    return ((n + m - 1) // m) * m


@functools.partial(jax.jit, static_argnames=("tile_b", "nogrid_max_bytes"))
def simple_nn_forward(x, params, tile_b=TILE_B, nogrid_max_bytes=NOGRID_MAX_BYTES):
    """x: [B, D]; params from prepare_params -> [B, O] (same dtype as x)."""
    w1, b1_2d, w2, b2_2d = params
    B, D = x.shape
    H = w1.shape[1]
    O = w2.shape[1]

    # NOTE: no wrapper-side cast of x (an extra HBM read+write pass around a
    # memory-bound kernel). Mixed x/weight dtypes are promoted in-kernel.

    flops = 2 * B * (D * H + H * O)
    bytes_accessed = (
        B * D * x.dtype.itemsize
        + D * H * w1.dtype.itemsize + H * 4
        + H * O * w2.dtype.itemsize + O * 4
        + B * O * x.dtype.itemsize
    )
    cost = pl.CostEstimate(
        flops=flops, transcendentals=0, bytes_accessed=bytes_accessed
    )

    # Single-block footprint: x + f32 fc1 activation + out + weights.
    weight_bytes = (D * H * w1.dtype.itemsize + H * 4
                    + H * O * w2.dtype.itemsize + O * 4)
    nogrid_bytes = (B * D * x.dtype.itemsize      # x block
                    + B * H * 4                   # f32 hidden activation
                    + B * O * x.dtype.itemsize    # output block
                    + weight_bytes)

    if nogrid_bytes <= nogrid_max_bytes:
        # VMEM-resident path: one invocation, no grid, no pipeline overhead.
        # Compute is negligible here, so pipelining has nothing to hide;
        # this path is preferred for every batch that fits the budget.
        return pl.pallas_call(
            _mlp_kernel,
            out_shape=jax.ShapeDtypeStruct((B, O), x.dtype),
            in_specs=[pl.BlockSpec(memory_space=pltpu.MemorySpace.VMEM)] * 5,
            out_specs=pl.BlockSpec(memory_space=pltpu.MemorySpace.VMEM),
            cost_estimate=cost,
        )(x, w1, b1_2d, w2, b2_2d)

    # Streaming path for very large B: big batch tiles amortize the per-step
    # pipeline cost; weights stay VMEM-resident (constant index maps); the
    # batch axis is "parallel" so v7x can shard tiles across both TCs.  tile
    # is capped at ~B/2 (rounded to 8) so there are always >= 2 grid tiles.
    # Ragged last tile: no jnp.pad / out[:B] — Pallas partial-block semantics
    # mask OOB output rows, and all rows are computed independently.
    tile = max(8, min(tile_b, _round_up(pl.cdiv(B, 2), 8)))
    num_tiles = pl.cdiv(B, tile)

    return pl.pallas_call(
        _mlp_kernel,
        out_shape=jax.ShapeDtypeStruct((B, O), x.dtype),
        grid=(num_tiles,),
        in_specs=[
            pl.BlockSpec((tile, D), lambda i: (i, 0)),   # x: streamed per tile
            pl.BlockSpec((D, H), lambda i: (0, 0)),      # w1: resident
            pl.BlockSpec((1, H), lambda i: (0, 0)),      # b1: resident
            pl.BlockSpec((H, O), lambda i: (0, 0)),      # w2: resident
            pl.BlockSpec((1, O), lambda i: (0, 0)),      # b2: resident
        ],
        out_specs=pl.BlockSpec((tile, O), lambda i: (i, 0)),  # full O width
        compiler_params=pltpu.CompilerParams(
            dimension_semantics=("parallel",),
        ),
        cost_estimate=cost,
    )(x, w1, b1_2d, w2, b2_2d)


def reference_forward(x, w1, b1, w2, b2):
    h = jnp.maximum(x @ w1 + b1, 0.0)
    return h @ w2 + b2


if __name__ == "__main__":
    input_size = 64
    output_size = 8

    key = jax.random.PRNGKey(0)
    kx, k1, kb1, k2, kb2, kx2, kx3 = jax.random.split(key, 7)

    # Deterministic parameter init (uniform, roughly PyTorch-Linear scale).
    bound1 = 1.0 / jnp.sqrt(input_size)
    bound2 = 1.0 / jnp.sqrt(HIDDEN)
    w1 = jax.random.uniform(k1, (input_size, HIDDEN), jnp.float32, -bound1, bound1)
    b1 = jax.random.uniform(kb1, (HIDDEN,), jnp.float32, -bound1, bound1)
    w2 = jax.random.uniform(k2, (HIDDEN, output_size), jnp.float32, -bound2, bound2)
    b2 = jax.random.uniform(kb2, (output_size,), jnp.float32, -bound2, bound2)

    params = prepare_params(w1, b1, w2, b2, use_bf16=False)

    # --- Small batch: single VMEM-resident block (no grid) ----------------
    batch = 8
    x = jax.random.normal(kx, (batch, input_size), dtype=jnp.float32)
    out = jax.block_until_ready(simple_nn_forward(x, params))
    ref = reference_forward(x, w1, b1, w2, b2)
    assert out.shape == (batch, output_size)
    assert jnp.allclose(out, ref, atol=1e-5, rtol=1e-5), "small-batch mismatch"

    # --- Gridded streaming path (forced), ragged last tile, no pad/slice --
    big_batch = 1000  # 1000 = 3*256 + 232 -> exercises the partial last tile
    xb = jax.random.normal(kx2, (big_batch, input_size), dtype=jnp.float32)
    outb = jax.block_until_ready(
        simple_nn_forward(xb, params, tile_b=256, nogrid_max_bytes=0)
    )
    refb = reference_forward(xb, w1, b1, w2, b2)
    assert outb.shape == (big_batch, output_size)
    assert jnp.allclose(outb, refb, atol=1e-4, rtol=1e-4), "tiled-path mismatch"

    # Same batch through the (now-preferred) no-grid path must also match.
    outn = jax.block_until_ready(simple_nn_forward(xb, params))
    assert jnp.allclose(outn, refb, atol=1e-4, rtol=1e-4), "no-grid mismatch"

    # --- bf16 path: bf16 x upstream + bf16 weights, loosened tolerance ----
    params_bf16 = prepare_params(w1, b1, w2, b2, use_bf16=True)
    xs = jax.random.normal(kx3, (16, input_size), dtype=jnp.float32)
    xs_bf16 = xs.astype(jnp.bfloat16)
    out_bf16 = jax.block_until_ready(simple_nn_forward(xs_bf16, params_bf16))
    ref_bf16 = reference_forward(
        xs_bf16.astype(jnp.float32),
        params_bf16[0].astype(jnp.float32), b1,
        params_bf16[2].astype(jnp.float32), b2,
    )
    assert out_bf16.dtype == jnp.bfloat16
    assert jnp.allclose(out_bf16.astype(jnp.float32), ref_bf16,
                        atol=5e-2, rtol=5e-2), "bf16-path mismatch"

    print("KERNEL_OK")
</pallas_src>

<mosaic_0001>
module attributes {stable_mosaic.version = 11 : i64} {
  func.func @_mlp_kernel(%arg0: memref<8x64xf32, #tpu.memory_space<vmem>>, %arg1: memref<64x128xf32, #tpu.memory_space<vmem>>, %arg2: memref<1x128xf32, #tpu.memory_space<vmem>>, %arg3: memref<128x8xf32, #tpu.memory_space<vmem>>, %arg4: memref<1x8xf32, #tpu.memory_space<vmem>>, %arg5: memref<8x8xf32, #tpu.memory_space<vmem>>) attributes {dimension_semantics = [], scalar_prefetch = 0 : i64, scratch_operands = 0 : i64, tpu.core_type = #tpu.core_type<tc>} {
    %c0 = arith.constant 0 : index
    %c0_0 = arith.constant 0 : index
    %0 = vector.load %arg0[%c0, %c0_0] : memref<8x64xf32, #tpu.memory_space<vmem>>, vector<8x64xf32>
    %c0_1 = arith.constant 0 : index
    %c0_2 = arith.constant 0 : index
    %1 = vector.load %arg1[%c0_1, %c0_2] : memref<64x128xf32, #tpu.memory_space<vmem>>, vector<64x128xf32>
    %cst = arith.constant dense<0.000000e+00> : vector<8x128xf32>
    %2 = tpu.matmul %0, %1, %cst {dimension_numbers = #tpu.dot_dimension_numbers<[1], [0], [0], [1], [0, 0, 1, 1], [], []>} : vector<8x64xf32>, vector<64x128xf32>, vector<8x128xf32> -> vector<8x128xf32>
    %c0_3 = arith.constant 0 : index
    %c0_4 = arith.constant 0 : index
    %3 = vector.load %arg2[%c0_3, %c0_4] : memref<1x128xf32, #tpu.memory_space<vmem>>, vector<1x128xf32>
    %4 = vector.broadcast %3 : vector<1x128xf32> to vector<8x128xf32>
    %5 = arith.addf %2, %4 : vector<8x128xf32>
    %cst_5 = arith.constant 0.000000e+00 : f32
    %6 = vector.broadcast %cst_5 : f32 to vector<8x128xf32>
    %7 = arith.maximumf %5, %6 : vector<8x128xf32>
    %c0_6 = arith.constant 0 : index
    %c0_7 = arith.constant 0 : index
    %8 = vector.load %arg3[%c0_6, %c0_7] : memref<128x8xf32, #tpu.memory_space<vmem>>, vector<128x8xf32>
    %cst_8 = arith.constant dense<0.000000e+00> : vector<8x8xf32>
    %9 = tpu.matmul %7, %8, %cst_8 {dimension_numbers = #tpu.dot_dimension_numbers<[1], [0], [0], [1], [0, 0, 1, 1], [], []>} : vector<8x128xf32>, vector<128x8xf32>, vector<8x8xf32> -> vector<8x8xf32>
    %c0_9 = arith.constant 0 : index
    %c0_10 = arith.constant 0 : index
    %10 = vector.load %arg4[%c0_9, %c0_10] : memref<1x8xf32, #tpu.memory_space<vmem>>, vector<1x8xf32>
    %11 = vector.broadcast %10 : vector<1x8xf32> to vector<8x8xf32>
    %12 = arith.addf %9, %11 : vector<8x8xf32>
    %c0_11 = arith.constant 0 : index
    %c0_12 = arith.constant 0 : index
    %13 = vector.load %arg5[%c0_11, %c0_12] : memref<8x8xf32, #tpu.memory_space<vmem>>, vector<8x8xf32>
    tpu.vector_store %arg5[%c0_11, %c0_12], %12 {strides = array<i32>} : memref<8x8xf32, #tpu.memory_space<vmem>>, vector<8x8xf32>,
    return
  }
}

</mosaic_0001>

<llo_original>
// kernel: simple_nn_forward.1
$region0: #{simple_nn_forward.1}
  #allocation0 [shape = 'u32[]', space=smem, size = 0x4, offset = 0x4, fixed_abs, tag = 'smem constant byte address 0x4 - core index']
  #allocation1 [shape = 'u32[144,128]{1,0:T(1,128)}', space=vmem, size = 0x12000, scoped, tag = 'internal scratch']
  %s0 = inlined_call_operand.vmem [shape: f32[8,64], index: 0, kind: input, shape index: {}]
  %s1 = inlined_call_operand.vmem [shape: f32[64,128], index: 1, kind: input, shape index: {}]
  %s2 = inlined_call_operand.vmem [shape: f32[1,128], index: 2, kind: input, shape index: {}]
  %s3 = inlined_call_operand.vmem [shape: f32[128,8], index: 3, kind: input, shape index: {}]
  %s4 = inlined_call_operand.vmem [shape: f32[1,8], index: 4, kind: input, shape index: {}]
  %s5 = inlined_call_operand.hbm [shape: f32[8,8], index: 5, kind: output, shape index: {}]
  %s6 = sld [smem:[#allocation0]]
  $region30: #{simple_nn_forward.1} parent=0
    _
  %s8 = ssub.s32 1, %s6
  %s9 = scalar_select 0, %s8, %s6
  $region1: #{simple_nn_forward.1} parent=0
    #allocation2 [shape = 'u8[4096]{0}', space=vmem, size = 0x1000, scoped, tag = 'output window, operand 0, single buffered']
    #allocation3 [shape = 's32[1]{0}', space=sflag, size = 0x4, scoped, tag = 'scoped memory for simple_nn_forward.1']
    %10 = vsyncpa [#allocation3], 0
    // Predicated region
    $region2: #{simple_nn_forward.1} parent=1 // pred_check
      _
    $region3: #{simple_nn_forward.1} parent=1 // pred_check_branch
      %12 = sbr.rel (0) target = $region5
    $region4: #{simple_nn_forward.1} parent=1 // pred_region
      _
    $region5: #{simple_nn_forward.1} parent=1 // pred_fallthru
      _
    // Predicated region
    $region6: #{simple_nn_forward.1} parent=1 // pred_check
      _
    $region7: #{simple_nn_forward.1} parent=1 // pred_check_branch
      %14 = sbr.rel (0) target = $region9
    $region8: #{simple_nn_forward.1} parent=1 // pred_region
      _
    $region9: #{simple_nn_forward.1} parent=1 // pred_fallthru
      _
    // Predicated region
    $region10: #{simple_nn_forward.1} parent=1 // pred_check
      _
    $region11: #{simple_nn_forward.1} parent=1 // pred_check_branch
      %16 = sbr.rel (0) target = $region13
    $region12: #{simple_nn_forward.1} parent=1 // pred_region
      _
    $region13: #{simple_nn_forward.1} parent=1 // pred_fallthru
      _
    // Predicated region
    $region14: #{simple_nn_forward.1} parent=1 // pred_check
      _
    $region15: #{simple_nn_forward.1} parent=1 // pred_check_branch
      %18 = sbr.rel (0) target = $region17
    $region16: #{simple_nn_forward.1} parent=1 // pred_region
      _
    $region17: #{simple_nn_forward.1} parent=1 // pred_fallthru
      _
    // Predicated region
    $region18: #{simple_nn_forward.1} parent=1 // pred_check
      _
    $region19: #{simple_nn_forward.1} parent=1 // pred_check_branch
      %20 = sbr.rel (0) target = $region21
    $region20: #{simple_nn_forward.1} parent=1 // pred_region
      _
    $region21: #{simple_nn_forward.1} parent=1 // pred_fallthru
      _
    %v21 = vld [vmem:[%s0] sm:$0xff]
    %v22 = vld [vmem:[%s1] sm:$0xff]
    %v23 = vld [vmem:[%s1 + $0x8] sm:$0xff]
    %v24 = vld [vmem:[%s1 + $0x10] sm:$0xff]
    %v25 = vld [vmem:[%s1 + $0x18] sm:$0xff]
    %v26 = vld [vmem:[%s1 + $0x20] sm:$0xff]
    %v27 = vld [vmem:[%s1 + $0x28] sm:$0xff]
    %v28 = vld [vmem:[%s1 + $0x30] sm:$0xff]
    %v29 = vld [vmem:[%s1 + $0x38] sm:$0xff]
    %v30 = vld [vmem:[%s2] sm:$0x1]
    %v32 = vlaneseq
    %v33 = vshrl.u32 %v32, 7
    %v34 = vsub.s32 0, %v33
    %v35 = vrot.slane %v30, %v34
    %vm37 = vcmask 523264
    %v39 = vsel %vm37, %v21, 0
    %41 = vmatprep.subr.mxu0 0.0
    %42 = vmatpush1.msra.mxu0 %v22
    %43 = vmatprep.subr.mxu0 0.0
    %44 = vmatpush1.msra.mxu0 %v23
    %45 = vmatprep.subr.mxu0 0.0
    %46 = vmatpush1.msra.mxu0 %v24
    %47 = vmatprep.subr.mxu0 0.0
    %48 = vmatpush1.msra.mxu0 %v25
    %49 = vmatprep.subr.mxu0 0.0
    %50 = vmatpush1.msra.mxu0 %v26
    %51 = vmatprep.subr.mxu0 0.0
    %52 = vmatpush1.msra.mxu0 %v27
    %53 = vmatprep.subr.mxu0 0.0
    %54 = vmatpush1.msra.mxu0 %v28
    %55 = vmatprep.subr.mxu0 0.0
    %56 = vmatpush1.msra.mxu0 %v29
    %57 = vmatprep.subr.mxu0 0.0
    %58 = vmatpush1.msra.mxu0 0.0
    %59 = vmatprep.subr.mxu0 0.0
    %60 = vmatpush1.msra.mxu0 0.0
    %61 = vmatprep.subr.mxu0 0.0
    %62 = vmatpush1.msra.mxu0 0.0
    %63 = vmatprep.subr.mxu0 0.0
    %64 = vmatpush1.msra.mxu0 0.0
    %65 = vmatprep.subr.mxu0 0.0
    %66 = vmatpush1.msra.mxu0 0.0
    %67 = vmatprep.subr.mxu0 0.0
    %68 = vmatpush1.msra.mxu0 0.0
    %69 = vmatprep.subr.mxu0 0.0
    %70 = vmatpush1.msra.mxu0 0.0
    %71 = vmatprep.subr.mxu0 0.0
    %72 = vmatpush1.msra.mxu0 0.0
    %73 = vmatprep.subr.mxu0 0.0
    %74 = vmatpush1.msra.mxu0 0.0
    %75 = vmatprep.subr.mxu0 0.0
    %76 = vmatpush1.msra.mxu0 0.0
    %77 = vmatprep.subr.mxu0 0.0
    %78 = vmatpush1.msra.mxu0 0.0
    %79 = vmatprep.subr.mxu0 0.0
    %80 = vmatpush1.msra.mxu0 0.0
    %81 = vmatprep.subr.mxu0 0.0
    %82 = vmatpush1.msra.mxu0 0.0
    %83 = vmatprep.subr.mxu0 0.0
    %84 = vmatpush1.msra.mxu0 0.0
    %85 = vmatprep.subr.mxu0 0.0
    %86 = vmatpush1.msra.mxu0 0.0
    %87 = vmatprep.subr.mxu0 0.0
    %88 = vmatpush1.msra.mxu0 0.0
    %89 = vmatprep.subr.mxu0 0.0
    %90 = vmatpush1.msra.mxu0 0.0
    %91 = vmatprep.subr.mxu0 0.0
    %92 = vmatpush1.msra.mxu0 0.0
    %93 = vmatprep.subr.mxu0 0.0
    %94 = vmatpush1.msra.mxu0 0.0
    %95 = vmatprep.subr.mxu0 0.0
    %96 = vmatpush1.msra.mxu0 0.0
    %97 = vmatprep.subr.mxu0 0.0
    %98 = vmatpush1.msra.mxu0 0.0
    %99 = vmatprep.subr.mxu0 0.0
    %100 = vmatpush1.msra.mxu0 0.0
    %101 = vmatprep.subr.mxu0 0.0
    %102 = vmatpush1.msra.mxu0 0.0
    %103 = vmatprep.subr.mxu0 0.0
    %104 = vmatpush1.msra.mxu0 0.0
    %105 = vmatprep.mubr.f32.mxu0 0.0
    %106 = vmatmul.mubr.f32.gmra.mrb[0].mxu0 %v39
    %v107 = vpop.f32.mrb[0].mxu0
    %v108 = vadd.f32 %v35, %v107
    %v109 = vpop.f32.mrb[0].mxu0
    %110 = vdwg.mxu0
    %v111 = vmax.f32 %v108, 0.0
    %v112 = vld [vmem:[%s3] sm:$0xff]
    %v113 = vld [vmem:[%s3 + $0x8] sm:$0xff]
    %v114 = vld [vmem:[%s3 + $0x10] sm:$0xff]
    %v115 = vld [vmem:[%s3 + $0x18] sm:$0xff]
    %v116 = vld [vmem:[%s3 + $0x20] sm:$0xff]
    %v117 = vld [vmem:[%s3 + $0x28] sm:$0xff]
    %v118 = vld [vmem:[%s3 + $0x30] sm:$0xff]
    %v119 = vld [vmem:[%s3 + $0x38] sm:$0xff]
    %v120 = vld [vmem:[%s3 + $0x40] sm:$0xff]
    %v121 = vld [vmem:[%s3 + $0x48] sm:$0xff]
    %v122 = vld [vmem:[%s3 + $0x50] sm:$0xff]
    %v123 = vld [vmem:[%s3 + $0x58] sm:$0xff]
    %v124 = vld [vmem:[%s3 + $0x60] sm:$0xff]
    %v125 = vld [vmem:[%s3 + $0x68] sm:$0xff]
    %v126 = vld [vmem:[%s3 + $0x70] sm:$0xff]
    %v127 = vld [vmem:[%s3 + $0x78] sm:$0xff]
    %v128 = vld [vmem:[%s4] sm:$0x1]
    %v130 = vlaneseq
    %v131 = vshrl.u32 %v130, 7
    %v132 = vsub.s32 0, %v131
    %v133 = vrot.slane %v128, %v132
    %135 = vmatprep.subr.mxu0 0.0
    %136 = vmatpush1.msra.mxu0 %v112
    %137 = vmatprep.subr.mxu0 0.0
    %138 = vmatpush1.msra.mxu0 %v113
    %139 = vmatprep.subr.mxu0 0.0
    %140 = vmatpush1.msra.mxu0 %v114
    %141 = vmatprep.subr.mxu0 0.0
    %142 = vmatpush1.msra.mxu0 %v115
    %143 = vmatprep.subr.mxu0 0.0
    %144 = vmatpush1.msra.mxu0 %v116
    %145 = vmatprep.subr.mxu0 0.0
    %146 = vmatpush1.msra.mxu0 %v117
    %147 = vmatprep.subr.mxu0 0.0
    %148 = vmatpush1.msra.mxu0 %v118
    %149 = vmatprep.subr.mxu0 0.0
    %150 = vmatpush1.msra.mxu0 %v119
    %151 = vmatprep.subr.mxu0 0.0
    %152 = vmatpush1.msra.mxu0 %v120
    %153 = vmatprep.subr.mxu0 0.0
    %154 = vmatpush1.msra.mxu0 %v121
    %155 = vmatprep.subr.mxu0 0.0
    %156 = vmatpush1.msra.mxu0 %v122
    %157 = vmatprep.subr.mxu0 0.0
    %158 = vmatpush1.msra.mxu0 %v123
    %159 = vmatprep.subr.mxu0 0.0
    %160 = vmatpush1.msra.mxu0 %v124
    %161 = vmatprep.subr.mxu0 0.0
    %162 = vmatpush1.msra.mxu0 %v125
    %163 = vmatprep.subr.mxu0 0.0
    %164 = vmatpush1.msra.mxu0 %v126
    %165 = vmatprep.subr.mxu0 0.0
    %166 = vmatpush1.msra.mxu0 %v127
    %167 = vmatprep.subr.mxu0 0.0
    %168 = vmatpush1.msra.mxu0 0.0
    %169 = vmatprep.subr.mxu0 0.0
    %170 = vmatpush1.msra.mxu0 0.0
    %171 = vmatprep.subr.mxu0 0.0
    %172 = vmatpush1.msra.mxu0 0.0
    %173 = vmatprep.subr.mxu0 0.0
    %174 = vmatpush1.msra.mxu0 0.0
    %175 = vmatprep.subr.mxu0 0.0
    %176 = vmatpush1.msra.mxu0 0.0
    %177 = vmatprep.subr.mxu0 0.0
    %178 = vmatpush1.msra.mxu0 0.0
    %179 = vmatprep.subr.mxu0 0.0
    %180 = vmatpush1.msra.mxu0 0.0
    %181 = vmatprep.subr.mxu0 0.0
    %182 = vmatpush1.msra.mxu0 0.0
    %183 = vmatprep.subr.mxu0 0.0
    %184 = vmatpush1.msra.mxu0 0.0
    %185 = vmatprep.subr.mxu0 0.0
    %186 = vmatpush1.msra.mxu0 0.0
    %187 = vmatprep.subr.mxu0 0.0
    %188 = vmatpush1.msra.mxu0 0.0
    %189 = vmatprep.subr.mxu0 0.0
    %190 = vmatpush1.msra.mxu0 0.0
    %191 = vmatprep.subr.mxu0 0.0
    %192 = vmatpush1.msra.mxu0 0.0
    %193 = vmatprep.subr.mxu0 0.0
    %194 = vmatpush1.msra.mxu0 0.0
    %195 = vmatprep.subr.mxu0 0.0
    %196 = vmatpush1.msra.mxu0 0.0
    %197 = vmatprep.subr.mxu0 0.0
    %198 = vmatpush1.msra.mxu0 0.0
    %199 = vmatprep.mubr.f32.mxu0 0.0
    %200 = vmatmul.mubr.f32.gmra.mrb[0].mxu0 %v111
    %v201 = vpop.f32.mrb[0].mxu0
    %v202 = vadd.f32 %v133, %v201
    %v203 = vpop.f32.mrb[0].mxu0
    %204 = vdwg.mxu0
    %vm205 = vcmask 64512
    %206 = vst.msk [vmem:[#allocation2] sm:$0xff] %vm205, %v202
    // Predicated region
    $region22: #{simple_nn_forward.1} parent=1 // pred_check
      _
    $region23: #{simple_nn_forward.1} parent=1 // pred_check_branch
      %208 = sbr.rel (0) target = $region25
    $region24: #{simple_nn_forward.1} parent=1 // pred_region
      %s210 = ssub.s32 128, 128
      %211 = vsyncadd [#allocation3], %s210
      %s213 = sshll.u32 [#allocation2], 4
      %s214 = int_to_ptr.vmem [resolvable:$true] %s213
      %216 = dma.vmem_to_hbm [thread:$0]  %s214, 128, %s5, [#allocation3]
    $region25: #{simple_nn_forward.1} parent=1 // pred_fallthru
      _
    // Predicated region
    $region26: #{simple_nn_forward.1} parent=1 // pred_check
      _
    $region27: #{simple_nn_forward.1} parent=1 // pred_check_branch
      %218 = sbr.rel (0) target = $region29
    $region28: #{simple_nn_forward.1} parent=1 // pred_region
      %219 = dma.done [#allocation3], 128
    $region29: #{simple_nn_forward.1} parent=1 // pred_fallthru
      _
    %220 = vsyncpa [#allocation3], 1

</llo_original>
